<compile_context>
chip_gen: v7x
topology: tpu7x:2x2x1
jax: 0.10.0
libtpu: 0.0.40
codegen_flags: <defaults>
</compile_context>

<pallas_src>
import functools

import jax
import jax.numpy as jnp
from jax.experimental import pallas as pl
from jax.experimental.pallas import tpu as pltpu


# ----------------------------- kernels ------------------------------------


def _nonlocal_fused_kernel(x_ref, w_ref, b_ref, o_ref, *, inv_n):
    """Single pass: one (bt, C, N) slab; C on sublanes, N on lanes."""
    x = x_ref[...].astype(jnp.float32)                       # (bt, C, N)

    w = w_ref[...]                                            # (5, C, 1) f32
    w_th = w[0][None, :, :]
    w_ph = w[1][None, :, :]
    w_g = w[2][None, :, :]
    w_eff = w[3][None, :, :]
    b_eff = w[4][None, :, :]
    b_th = b_ref[0]
    b_ph = b_ref[1]
    b_g = b_ref[2]

    # 1x1 convs C -> 1: VPU broadcast-multiply + sublane reduce over C.
    theta = jnp.sum(x * w_th, axis=1, keepdims=True) + b_th   # (bt, 1, N)
    phi = jnp.sum(x * w_ph, axis=1, keepdims=True) + b_ph     # (bt, 1, N)
    g = jnp.sum(x * w_g, axis=1, keepdims=True) + b_g         # (bt, 1, N)

    # Exact rank-1 rewrite of (theta @ phi^T / N) @ g.
    s = jnp.sum(phi * g, axis=2, keepdims=True) * inv_n       # (bt, 1, 1)
    y = theta * s                                             # (bt, 1, N)

    # Fused W (1 -> C) + BN scale/shift, then residual add.
    o_ref[...] = (x + w_eff * y + b_eff).astype(o_ref.dtype)


def _nonlocal_nsplit_kernel(x_ref, w_ref, b_ref, o_ref, s_acc,
                            *, inv_n, n_total, n_chunk, mask_tail):
    """Two-phase N-tiled variant.

    grid = (b_tiles, 2, n_tiles). Phase 0 accumulates s = sum_n(phi * g) per
    batch into s_acc; phase 1 re-reads x and writes the output chunk.
    """
    phase = pl.program_id(1)
    nj = pl.program_id(2)

    x = x_ref[...].astype(jnp.float32)                        # (bt, C, nc)

    w = w_ref[...]                                            # (5, C, 1) f32
    w_th = w[0][None, :, :]
    w_ph = w[1][None, :, :]
    w_g = w[2][None, :, :]
    w_eff = w[3][None, :, :]
    b_eff = w[4][None, :, :]
    b_th = b_ref[0]
    b_ph = b_ref[1]
    b_g = b_ref[2]

    @pl.when(phase == 0)
    def _phase0():
        @pl.when(nj == 0)
        def _init():
            s_acc[...] = jnp.zeros_like(s_acc)

        phi = jnp.sum(x * w_ph, axis=1, keepdims=True) + b_ph   # (bt, 1, nc)
        g = jnp.sum(x * w_g, axis=1, keepdims=True) + b_g       # (bt, 1, nc)
        pg = phi * g
        if mask_tail:
            lane = jax.lax.broadcasted_iota(jnp.int32, pg.shape, 2)
            valid = (nj * n_chunk + lane) < n_total
            pg = jnp.where(valid, pg, 0.0)
        s_acc[...] += jnp.sum(pg, axis=2, keepdims=True)

    @pl.when(phase == 1)
    def _phase1():
        theta = jnp.sum(x * w_th, axis=1, keepdims=True) + b_th  # (bt, 1, nc)
        y = theta * (s_acc[...] * inv_n)                         # (bt, 1, nc)
        o_ref[...] = (x + w_eff * y + b_eff).astype(o_ref.dtype)


# ----------------------------- tiling plan ---------------------------------


def _round_up(a, b):
    return (a + b - 1) // b * b


def _tpu_vmem_capacity_bytes():
    """Generation-aware VMEM capacity (v5e/v6e: 128 MiB, v7x: 64 MiB/TC)."""
    try:
        cap = int(pltpu.get_tpu_info().vmem_capacity_bytes)
        if cap > 0:
            return cap
    except Exception:
        pass
    return 64 << 20  # conservative (v7x per-TC); safe lower bound everywhere


def _plan_tiling(B, C, N, itemsize, n_chunk_req=None):
    """Pick (batch_tile, n_chunk, vmem_limit_bytes).

    Footprint model: Pallas double-buffers both the x input block and the
    output block, so pipeline VMEM ~= 4 * block_bytes (+ weights/scratch).
    Small C is padded to the sublane tile (8 for f32, 16 for bf16), so the
    budget is computed on the padded footprint.
    """
    cap = _tpu_vmem_capacity_bytes()
    # Keep 4x block under ~60% of physical VMEM; blocks above ~8 MiB give
    # diminishing returns for this purely HBM-bound kernel.
    slab_cap = max(1 << 20, min(8 << 20, int(cap * 0.6) // 4))

    sublane = max(8, 32 // max(itemsize, 1))          # f32: 8, bf16: 16, int8: 32
    c_pad = _round_up(C, sublane)

    if n_chunk_req is not None:
        nc = max(128, (min(n_chunk_req, N) // 128) * 128)
        if nc >= N:
            nc = N
    else:
        full_row_bytes = c_pad * _round_up(N, 128) * itemsize
        if full_row_bytes <= slab_cap:
            nc = N
        else:
            nc = min(N, max(128, (slab_cap // (c_pad * itemsize)) // 128 * 128))

    nc_pad = _round_up(min(nc, N), 128)
    row_bytes = c_pad * nc_pad * itemsize             # one batch's padded block bytes

    # As many batches per step as fit the slab, but keep >= ~4 grid steps
    # (>= 2 for small B) so both v7x TCs get work and DMA overlaps compute.
    bt_vmem = max(1, slab_cap // max(row_bytes, 1))
    if B >= 4:
        bt_cap = max(1, B // 4)
    elif B >= 2:
        bt_cap = max(1, B // 2)
    else:
        bt_cap = 1
    bt = max(1, min(B, bt_vmem, bt_cap))

    block_bytes = bt * row_bytes
    weight_bytes = 4 * (5 * c_pad * 128 + 3 * 128)    # tiny, padded estimate
    pipeline_bytes = 4 * block_bytes + 2 * weight_bytes + (2 << 20)
    vmem_limit = int(min(cap, max(pipeline_bytes, 16 << 20)))
    return bt, nc, vmem_limit


# ----------------------------- wrapper --------------------------------------


def non_local_forward(x_nchw, params, *, n_chunk=None, donate_x=False):
    """Forward pass of Non_local. x_nchw: (B, C, H, W), any float dtype.

    HBM I/O stays in x's dtype (pass bf16 for ~2x bandwidth); compute is f32.
    BatchNorm is folded in eval mode (running stats).
    """
    B, C, H, W = x_nchw.shape
    N = H * W
    x_bcn = x_nchw.reshape(B, C, N)                   # N stays on the lane axis
    io_dtype = x_bcn.dtype
    itemsize = x_bcn.dtype.itemsize

    # Fold W's 1x1 conv (1 -> C) bias + BatchNorm (running stats) into one
    # per-channel scale/shift. Torch init has gamma = beta = 0 -> identity block.
    eps = 1e-5
    inv_std = 1.0 / jnp.sqrt(params["bn_var"].astype(jnp.float32) + eps)
    bn_scale = params["bn_gamma"].astype(jnp.float32) * inv_std
    bn_shift = (params["bn_beta"].astype(jnp.float32)
                - params["bn_mean"].astype(jnp.float32) * bn_scale)
    w_eff = params["W_w"].reshape(C).astype(jnp.float32) * bn_scale
    b_eff = params["W_b"].reshape(C).astype(jnp.float32) * bn_scale + bn_shift

    # All per-channel vectors merged into a single (5, C, 1) operand.
    w_all = jnp.stack([
        params["theta_w"].reshape(C).astype(jnp.float32),
        params["phi_w"].reshape(C).astype(jnp.float32),
        params["g_w"].reshape(C).astype(jnp.float32),
        w_eff,
        b_eff,
    ], axis=0).reshape(5, C, 1)

    # theta/phi/g scalar biases ride in SMEM.
    b_proj = jnp.stack([params["theta_b"].reshape(()),
                        params["phi_b"].reshape(()),
                        params["g_b"].reshape(())], axis=0).astype(jnp.float32)

    bt, nc, vmem_limit = _plan_tiling(B, C, N, itemsize, n_chunk_req=n_chunk)
    grid_b = pl.cdiv(B, bt)
    io_alias = {0: 0} if donate_x else {}

    if nc >= N:
        # Single-pass fused kernel: whole N per block.
        kernel = functools.partial(_nonlocal_fused_kernel, inv_n=1.0 / N)
        z_bcn = pl.pallas_call(
            kernel,
            out_shape=jax.ShapeDtypeStruct((B, C, N), io_dtype),
            grid=(grid_b,),
            in_specs=[
                pl.BlockSpec((bt, C, N), lambda i: (i, 0, 0)),          # x slab
                pl.BlockSpec((5, C, 1), lambda i: (0, 0, 0)),           # merged weights
                pl.BlockSpec(memory_space=pltpu.MemorySpace.SMEM),      # scalar biases
            ],
            out_specs=pl.BlockSpec((bt, C, N), lambda i: (i, 0, 0)),
            input_output_aliases=io_alias,
            compiler_params=pltpu.CompilerParams(
                dimension_semantics=("parallel",),
                vmem_limit_bytes=vmem_limit),
        )(x_bcn, w_all, b_proj)
    else:
        # Two-phase N-tiled kernel for large C*N.
        grid_n = pl.cdiv(N, nc)
        mask_tail = (N % nc) != 0
        kernel = functools.partial(_nonlocal_nsplit_kernel, inv_n=1.0 / N,
                                   n_total=N, n_chunk=nc, mask_tail=mask_tail)
        z_bcn = pl.pallas_call(
            kernel,
            out_shape=jax.ShapeDtypeStruct((B, C, N), io_dtype),
            grid=(grid_b, 2, grid_n),
            in_specs=[
                pl.BlockSpec((bt, C, nc), lambda b, p, n: (b, 0, n)),
                pl.BlockSpec((5, C, 1), lambda b, p, n: (0, 0, 0)),
                pl.BlockSpec(memory_space=pltpu.MemorySpace.SMEM),
            ],
            # Phase 0 never writes: keep the output block index parked at
            # (b, 0, 0) so no garbage writeback happens before phase 1.
            out_specs=pl.BlockSpec((bt, C, nc), lambda b, p, n: (b, 0, p * n)),
            scratch_shapes=[pltpu.VMEM((bt, 1, 1), jnp.float32)],
            input_output_aliases=io_alias,
            compiler_params=pltpu.CompilerParams(
                dimension_semantics=("parallel", "arbitrary", "arbitrary"),
                vmem_limit_bytes=vmem_limit),
        )(x_bcn, w_all, b_proj)

    return z_bcn.reshape(B, C, H, W)


# ----------------------------- reference ------------------------------------


def non_local_reference(x_nchw, params):
    """Pure-JAX reference mirroring the PyTorch forward (eval-mode BN), using
    the explicit (N, N) attention map — validates the in-kernel rank-1 rewrite."""
    B, C, H, W = x_nchw.shape
    N = H * W
    x_flat = x_nchw.astype(jnp.float32).reshape(B, C, N)

    def conv1x1(w, b, x):                                  # w: (out, C)
        return jnp.einsum("oc,bcn->bon", w, x) + b[None, :, None]

    theta = conv1x1(params["theta_w"].reshape(1, C), params["theta_b"], x_flat)
    phi = conv1x1(params["phi_w"].reshape(1, C), params["phi_b"], x_flat)
    g = conv1x1(params["g_w"].reshape(1, C), params["g_b"], x_flat)

    theta_t = jnp.transpose(theta, (0, 2, 1))              # (B, N, 1)
    g_t = jnp.transpose(g, (0, 2, 1))                      # (B, N, 1)
    f = jnp.matmul(theta_t, phi) / N                       # (B, N, N)
    y = jnp.matmul(f, g_t)                                 # (B, N, 1)
    y = jnp.transpose(y, (0, 2, 1))                        # (B, 1, N)

    wy = conv1x1(params["W_w"].reshape(C, 1), params["W_b"], y)   # (B, C, N)
    eps = 1e-5
    inv_std = 1.0 / jnp.sqrt(params["bn_var"] + eps)
    scale = (params["bn_gamma"] * inv_std)[None, :, None]
    shift = (params["bn_beta"] - params["bn_mean"] * params["bn_gamma"] * inv_std)[None, :, None]
    return (scale * wy + shift + x_flat).reshape(B, C, H, W).astype(x_nchw.dtype)


# ----------------------------- test harness ---------------------------------


if __name__ == "__main__":
    key = jax.random.PRNGKey(0)
    B, C, H, W = 2, 4, 16, 16
    ks = jax.random.split(key, 13)

    x = jax.random.normal(ks[0], (B, C, H, W), jnp.float32)

    base = {
        "g_w": 0.1 * jax.random.normal(ks[1], (1, C, 1, 1), jnp.float32),
        "g_b": 0.01 * jax.random.normal(ks[2], (1,), jnp.float32),
        "theta_w": 0.1 * jax.random.normal(ks[3], (1, C, 1, 1), jnp.float32),
        "theta_b": 0.01 * jax.random.normal(ks[4], (1,), jnp.float32),
        "phi_w": 0.1 * jax.random.normal(ks[5], (1, C, 1, 1), jnp.float32),
        "phi_b": 0.01 * jax.random.normal(ks[6], (1,), jnp.float32),
        "W_w": 0.1 * jax.random.normal(ks[7], (C, 1, 1, 1), jnp.float32),
        "W_b": 0.01 * jax.random.normal(ks[8], (C,), jnp.float32),
    }

    # (1) Faithful torch init: BN gamma = beta = 0, running stats at defaults
    #     -> the block is exactly an identity.
    params_init = dict(base,
                       bn_gamma=jnp.zeros((C,), jnp.float32),
                       bn_beta=jnp.zeros((C,), jnp.float32),
                       bn_mean=jnp.zeros((C,), jnp.float32),
                       bn_var=jnp.ones((C,), jnp.float32))

    z = non_local_forward(x, params_init)
    jax.block_until_ready(z)
    z_ref = non_local_reference(x, params_init)
    assert jnp.allclose(z, z_ref, atol=1e-4, rtol=1e-4), "fused: mismatch vs reference"
    assert jnp.allclose(z, x, atol=1e-5), "expected identity with zero-init BN"

    # (2) Non-trivial BN (eval-mode running stats) to exercise the W + BN fold.
    params_rand = dict(base,
                       bn_gamma=0.5 + 0.1 * jax.random.normal(ks[9], (C,), jnp.float32),
                       bn_beta=0.1 * jax.random.normal(ks[10], (C,), jnp.float32),
                       bn_mean=0.1 * jax.random.normal(ks[11], (C,), jnp.float32),
                       bn_var=jax.random.uniform(ks[12], (C,), jnp.float32,
                                                 minval=0.5, maxval=1.5))

    z2 = non_local_forward(x, params_rand)
    jax.block_until_ready(z2)
    z2_ref = non_local_reference(x, params_rand)
    assert jnp.allclose(z2, z2_ref, atol=1e-4, rtol=1e-4), "fused+BN: mismatch vs reference"

    # (3) Force the two-phase N-tiled path (n_chunk=128 over N=256) and verify it
    #     matches the same reference.
    z3 = non_local_forward(x, params_rand, n_chunk=128)
    jax.block_until_ready(z3)
    assert jnp.allclose(z3, z2_ref, atol=1e-4, rtol=1e-4), "N-split: mismatch vs reference"

    # TODO(synk): BatchNorm is folded with eval-mode running statistics; a
    # training-mode forward (batch statistics) is not reproduced here.
    print("KERNEL_OK")
</pallas_src>

<mosaic_0001>
module attributes {stable_mosaic.version = 11 : i64} {
  func.func @_nonlocal_fused_kernel(%arg0: i32, %arg1: memref<1x4x256xf32, #tpu.memory_space<vmem>>, %arg2: memref<5x4x1xf32, #tpu.memory_space<vmem>>, %arg3: memref<3xf32, #tpu.memory_space<smem>>, %arg4: memref<1x4x256xf32, #tpu.memory_space<vmem>>) attributes {dimension_semantics = [#tpu.dimension_semantics<parallel>], iteration_bounds = array<i64: 2>, scalar_prefetch = 0 : i64, scratch_operands = 0 : i64, tpu.core_type = #tpu.core_type<tc>, window_params = [{transform_indices = @transform_0, window_bounds = array<i64: 1, 4, 256>}, {pipeline_mode = #tpu.pipeline_mode<synchronous>, transform_indices = @transform_1, window_bounds = array<i64: 5, 4, 1>}, {transform_indices = @transform_2, window_bounds = array<i64: 3>}, {transform_indices = @transform_3, window_bounds = array<i64: 1, 4, 256>}]} {
    %c0 = arith.constant 0 : index
    %c0_0 = arith.constant 0 : index
    %c0_1 = arith.constant 0 : index
    %0 = vector.load %arg1[%c0, %c0_0, %c0_1] : memref<1x4x256xf32, #tpu.memory_space<vmem>>, vector<1x4x256xf32>
    %c0_2 = arith.constant 0 : index
    %c0_3 = arith.constant 0 : index
    %c0_4 = arith.constant 0 : index
    %1 = vector.load %arg2[%c0_2, %c0_3, %c0_4] : memref<5x4x1xf32, #tpu.memory_space<vmem>>, vector<5x4x1xf32>
    %2 = vector.extract_strided_slice %1 {offsets = [0, 0, 0], sizes = [1, 4, 1], strides = [1, 1, 1]} : vector<5x4x1xf32> to vector<1x4x1xf32>
    %3 = vector.shape_cast %2 : vector<1x4x1xf32> to vector<4x1xf32>
    %4 = vector.shape_cast %3 : vector<4x1xf32> to vector<1x4x1xf32>
    %5 = vector.extract_strided_slice %1 {offsets = [1, 0, 0], sizes = [1, 4, 1], strides = [1, 1, 1]} : vector<5x4x1xf32> to vector<1x4x1xf32>
    %6 = vector.shape_cast %5 : vector<1x4x1xf32> to vector<4x1xf32>
    %7 = vector.shape_cast %6 : vector<4x1xf32> to vector<1x4x1xf32>
    %8 = vector.extract_strided_slice %1 {offsets = [2, 0, 0], sizes = [1, 4, 1], strides = [1, 1, 1]} : vector<5x4x1xf32> to vector<1x4x1xf32>
    %9 = vector.shape_cast %8 : vector<1x4x1xf32> to vector<4x1xf32>
    %10 = vector.shape_cast %9 : vector<4x1xf32> to vector<1x4x1xf32>
    %11 = vector.extract_strided_slice %1 {offsets = [3, 0, 0], sizes = [1, 4, 1], strides = [1, 1, 1]} : vector<5x4x1xf32> to vector<1x4x1xf32>
    %12 = vector.shape_cast %11 : vector<1x4x1xf32> to vector<4x1xf32>
    %13 = vector.shape_cast %12 : vector<4x1xf32> to vector<1x4x1xf32>
    %14 = vector.extract_strided_slice %1 {offsets = [4, 0, 0], sizes = [1, 4, 1], strides = [1, 1, 1]} : vector<5x4x1xf32> to vector<1x4x1xf32>
    %15 = vector.shape_cast %14 : vector<1x4x1xf32> to vector<4x1xf32>
    %16 = vector.shape_cast %15 : vector<4x1xf32> to vector<1x4x1xf32>
    %c0_5 = arith.constant 0 : index
    %17 = memref.load %arg3[%c0_5] : memref<3xf32, #tpu.memory_space<smem>>
    %c1 = arith.constant 1 : index
    %18 = memref.load %arg3[%c1] : memref<3xf32, #tpu.memory_space<smem>>
    %c2 = arith.constant 2 : index
    %19 = memref.load %arg3[%c2] : memref<3xf32, #tpu.memory_space<smem>>
    %20 = vector.broadcast %4 : vector<1x4x1xf32> to vector<1x4x256xf32>
    %21 = arith.mulf %0, %20 : vector<1x4x256xf32>
    %cst = arith.constant dense<0.000000e+00> : vector<1x256xf32>
    %22 = vector.multi_reduction <add>, %21, %cst [1] : vector<1x4x256xf32> to vector<1x256xf32>
    %23 = vector.shape_cast %22 : vector<1x256xf32> to vector<1x1x256xf32>
    %24 = vector.broadcast %17 : f32 to vector<1x1x256xf32>
    %25 = arith.addf %23, %24 : vector<1x1x256xf32>
    %26 = vector.broadcast %7 : vector<1x4x1xf32> to vector<1x4x256xf32>
    %27 = arith.mulf %0, %26 : vector<1x4x256xf32>
    %cst_6 = arith.constant dense<0.000000e+00> : vector<1x256xf32>
    %28 = vector.multi_reduction <add>, %27, %cst_6 [1] : vector<1x4x256xf32> to vector<1x256xf32>
    %29 = vector.shape_cast %28 : vector<1x256xf32> to vector<1x1x256xf32>
    %30 = vector.broadcast %18 : f32 to vector<1x1x256xf32>
    %31 = arith.addf %29, %30 : vector<1x1x256xf32>
    %32 = vector.broadcast %10 : vector<1x4x1xf32> to vector<1x4x256xf32>
    %33 = arith.mulf %0, %32 : vector<1x4x256xf32>
    %cst_7 = arith.constant dense<0.000000e+00> : vector<1x256xf32>
    %34 = vector.multi_reduction <add>, %33, %cst_7 [1] : vector<1x4x256xf32> to vector<1x256xf32>
    %35 = vector.shape_cast %34 : vector<1x256xf32> to vector<1x1x256xf32>
    %36 = vector.broadcast %19 : f32 to vector<1x1x256xf32>
    %37 = arith.addf %35, %36 : vector<1x1x256xf32>
    %38 = arith.mulf %31, %37 : vector<1x1x256xf32>
    %cst_8 = arith.constant dense<0.000000e+00> : vector<1x1xf32>
    %39 = vector.multi_reduction <add>, %38, %cst_8 [2] : vector<1x1x256xf32> to vector<1x1xf32>
    %40 = vector.shape_cast %39 : vector<1x1xf32> to vector<1x1x1xf32>
    %cst_9 = arith.constant 3.906250e-03 : f32
    %41 = vector.broadcast %cst_9 : f32 to vector<1x1x1xf32>
    %42 = arith.mulf %40, %41 : vector<1x1x1xf32>
    %43 = vector.broadcast %42 : vector<1x1x1xf32> to vector<1x1x256xf32>
    %44 = arith.mulf %25, %43 : vector<1x1x256xf32>
    %45 = vector.broadcast %13 : vector<1x4x1xf32> to vector<1x4x256xf32>
    %46 = vector.broadcast %44 : vector<1x1x256xf32> to vector<1x4x256xf32>
    %47 = arith.mulf %45, %46 : vector<1x4x256xf32>
    %48 = arith.addf %0, %47 : vector<1x4x256xf32>
    %49 = vector.broadcast %16 : vector<1x4x1xf32> to vector<1x4x256xf32>
    %50 = arith.addf %48, %49 : vector<1x4x256xf32>
    %c0_10 = arith.constant 0 : index
    %c0_11 = arith.constant 0 : index
    %c0_12 = arith.constant 0 : index
    %51 = vector.load %arg4[%c0_10, %c0_11, %c0_12] : memref<1x4x256xf32, #tpu.memory_space<vmem>>, vector<1x4x256xf32>
    tpu.vector_store %arg4[%c0_10, %c0_11, %c0_12], %50 {strides = array<i32>} : memref<1x4x256xf32, #tpu.memory_space<vmem>>, vector<1x4x256xf32>,
    return
  }
  func.func @transform_0(%arg0: i32) -> (i32, i32, i32) {
    %c0_i32 = arith.constant 0 : i32
    %c0_i32_0 = arith.constant 0 : i32
    %c0_i32_1 = arith.constant 0 : i32
    return %arg0, %c0_i32, %c0_i32_0 : i32, i32, i32
  }
  func.func @transform_1(%arg0: i32) -> (i32, i32, i32) {
    %c0_i32 = arith.constant 0 : i32
    %c0_i32_0 = arith.constant 0 : i32
    %c0_i32_1 = arith.constant 0 : i32
    %c0_i32_2 = arith.constant 0 : i32
    return %c0_i32, %c0_i32_0, %c0_i32_1 : i32, i32, i32
  }
  func.func @transform_2(%arg0: i32) -> i32 {
    %c0_i32 = arith.constant 0 : i32
    %c0_i32_0 = arith.constant 0 : i32
    return %c0_i32 : i32
  }
  func.func @transform_3(%arg0: i32) -> (i32, i32, i32) {
    %c0_i32 = arith.constant 0 : i32
    %c0_i32_0 = arith.constant 0 : i32
    %c0_i32_1 = arith.constant 0 : i32
    return %arg0, %c0_i32, %c0_i32_0 : i32, i32, i32
  }
}

</mosaic_0001>

<llo_original>
// kernel: tpu_custom_call.1
$region0: #{tpu_custom_call.1}
  #allocation0 [shape = 'u32[]', space=smem, size = 0x4, offset = 0x4, fixed_abs, tag = 'smem constant byte address 0x4 - core index']
  #allocation1 [shape = 'u32[144,128]{1,0:T(1,128)}', space=vmem, size = 0x12000, scoped, tag = 'internal scratch']
  %s0 = inlined_call_operand.vmem [shape: f32[2,4,256], index: 0, kind: input, shape index: {}]
  %s1 = inlined_call_operand.vmem [shape: f32[5,4,1], index: 1, kind: input, shape index: {}]
  %s2 = inlined_call_operand.vmem [shape: f32[3], index: 2, kind: input, shape index: {}]
  %s3 = inlined_call_operand.hbm [shape: f32[2,4,256], index: 3, kind: output, shape index: {}]
  %s4 = sld [smem:[#allocation0]]
  $region49: #{tpu_custom_call.1} parent=0
    _
  %s6 = ssub.s32 1, %s4
  %s7 = scalar_select 0, %s6, %s4
  $region1: #{tpu_custom_call.1} parent=0
    #allocation2 [shape = 'u8[512]{0}', space=smem, size = 0x200, scoped, tag = 'input window, operand 2, single buffered']
    #allocation3 [shape = 's32[2]{0}', space=sflag, size = 0x8, scoped, tag = 'scoped memory for tpu_custom_call.1']
    #allocation4 [shape = 's32[2]{0}', space=sflag, size = 0x8, scoped, tag = 'scoped memory for tpu_custom_call.1']
    #allocation5 [shape = 'u8[8192]{0}', space=vmem, size = 0x2000, scoped, tag = 'output window, operand 0']
    %8 = vsyncpa [#allocation4], 0
    %9 = vsyncpa [#allocation3], 0
    %s10 = scalar_lea.sflag [#allocation3], 1
    %11 = vsyncpa %s10, 0
    loop: start=0, step=1, limit=4
    $region2: #{tpu_custom_call.1} parent=1 // loop_pre_header
      _
    $region3: #{tpu_custom_call.1} parent=1 // loop_header
      %s13 = sphi 0, %s17
      %p14 = scmp.ge.s32.totalorder %s13, 4
      %s23 = sphi 0, %s25
      %s26 = sphi 0, %s23
      %s27 = sphi 0, %s26
      %s43 = sphi 0, %s27
      %s47 = sphi 0, %s47
      %s49 = sphi 0, %s47
      %s50 = sphi 0, %s49
      %s64 = sphi 0, %s50
      %s68 = sphi 0, %s68
      %s70 = sphi 0, %s68
      %s71 = sphi 0, %s70
      %s85 = sphi 0, %s71
      %s91 = sphi 0, %s93
      %s94 = sphi 0, %s91
      %s95 = sphi 0, %s94
      %s111 = sphi 0, %s95
    $region4: #{tpu_custom_call.1} parent=1 // loop_header_branch
      %16 = sbr.rel (%p14) target = $region8
    $region5: #{tpu_custom_call.1} parent=1 // loop_body
      %s18 = ssub.s32 %s13, 1
      %s19 = ssub.s32 %s13, 2
      %s20 = sadd.s32 %s13, 1
      %s21 = ssub.s32 %s13, %s20
      %p22 = scmp.eq.s32.totalorder %s21, 0
      %s24 = sadd.s32 %s23, 1
      %s25 = scalar_select %p22, %s23, %s24
      %p28 = pneg %p22
      %p29 = scmp.eq.s32.totalorder %s13, 1
      %p30 = por %p28, %p29
      %p31 = scmp.ne.s32.totalorder %s23, %s26
      %p32 = scmp.eq.s32.totalorder %s13, 0
      %p33 = por %p31, %p32
      %p34 = scmp.ne.s32.totalorder %s23, %s26
      %p35 = scmp.eq.s32.totalorder %s18, 1
      %p36 = por %p34, %p35
      %p37 = scmp.ne.s32.totalorder %s26, %s27
      %p38 = scmp.eq.s32.totalorder %s18, 0
      %p39 = por %p37, %p38
      %p40 = scmp.ne.s32.totalorder %s26, %s27
      %p41 = scmp.eq.s32.totalorder %s19, 1
      %p42 = por %p40, %p41
      %p44 = scmp.ne.s32.totalorder %s27, %s43
      %p45 = scmp.eq.s32.totalorder %s19, 0
      %p46 = por %p44, %p45
      %s48 = sadd.s32 %s47, 1
      %p51 = scmp.eq.s32.totalorder %s13, 1
      %p52 = scmp.ne.s32.totalorder %s47, %s49
      %p53 = scmp.eq.s32.totalorder %s13, 0
      %p54 = por %p52, %p53
      %p55 = scmp.ne.s32.totalorder %s47, %s49
      %p56 = scmp.eq.s32.totalorder %s18, 1
      %p57 = por %p55, %p56
      %p58 = scmp.ne.s32.totalorder %s49, %s50
      %p59 = scmp.eq.s32.totalorder %s18, 0
      %p60 = por %p58, %p59
      %p61 = scmp.ne.s32.totalorder %s49, %s50
      %p62 = scmp.eq.s32.totalorder %s19, 1
      %p63 = por %p61, %p62
      %p65 = scmp.ne.s32.totalorder %s50, %s64
      %p66 = scmp.eq.s32.totalorder %s19, 0
      %p67 = por %p65, %p66
      %s69 = sadd.s32 %s68, 1
      %p72 = scmp.eq.s32.totalorder %s13, 1
      %p73 = scmp.ne.s32.totalorder %s68, %s70
      %p74 = scmp.eq.s32.totalorder %s13, 0
      %p75 = por %p73, %p74
      %p76 = scmp.ne.s32.totalorder %s68, %s70
      %p77 = scmp.eq.s32.totalorder %s18, 1
      %p78 = por %p76, %p77
      %p79 = scmp.ne.s32.totalorder %s70, %s71
      %p80 = scmp.eq.s32.totalorder %s18, 0
      %p81 = por %p79, %p80
      %p82 = scmp.ne.s32.totalorder %s70, %s71
      %p83 = scmp.eq.s32.totalorder %s19, 1
      %p84 = por %p82, %p83
      %p86 = scmp.ne.s32.totalorder %s71, %s85
      %p87 = scmp.eq.s32.totalorder %s19, 0
      %p88 = por %p86, %p87
      %s89 = ssub.s32 %s13, %s20
      %p90 = scmp.eq.s32.totalorder %s89, 0
      %s92 = sadd.s32 %s91, 1
      %s93 = scalar_select %p90, %s91, %s92
      %p96 = pneg %p90
      %p97 = scmp.eq.s32.totalorder %s13, 1
      %p98 = por %p96, %p97
      %p99 = scmp.ne.s32.totalorder %s91, %s94
      %p100 = scmp.eq.s32.totalorder %s13, 0
      %p101 = por %p99, %p100
      %p102 = scmp.ne.s32.totalorder %s91, %s94
      %p103 = scmp.eq.s32.totalorder %s18, 1
      %p104 = por %p102, %p103
      %p105 = scmp.ne.s32.totalorder %s94, %s95
      %p106 = scmp.eq.s32.totalorder %s18, 0
      %p107 = por %p105, %p106
      %p108 = scmp.ne.s32.totalorder %s94, %s95
      %p109 = scmp.eq.s32.totalorder %s19, 1
      %p110 = por %p108, %p109
      %p112 = scmp.ne.s32.totalorder %s95, %s111
      %p113 = scmp.eq.s32.totalorder %s19, 0
      %p114 = por %p112, %p113
      %p115 = scmp.le.s32.totalorder 1, %s13
      %p116 = scmp.lt.s32.totalorder %s13, 3
      %p117 = pnand %p115, %p116
      %p118 = pneg %p117
      // Predicated region
      $region9: #{tpu_custom_call.1} parent=5 // pred_check
        _
      $region10: #{tpu_custom_call.1} parent=5 // pred_check_branch
        %120 = sbr.rel (%p117) target = $region12
      $region11: #{tpu_custom_call.1} parent=5 // pred_region
        %s121 = ssub.s32 %s13, 1
        // Predicated region
        $region13: #{tpu_custom_call.1} parent=11 // pred_check
          %p122 = pneg %p60
        $region14: #{tpu_custom_call.1} parent=11 // pred_check_branch
          %124 = sbr.rel (%p122) target = $region16
        $region15: #{tpu_custom_call.1} parent=11 // pred_region
          _
        $region16: #{tpu_custom_call.1} parent=11 // pred_fallthru
          _
        // Predicated region
        $region17: #{tpu_custom_call.1} parent=11 // pred_check
          %p125 = pneg %p81
        $region18: #{tpu_custom_call.1} parent=11 // pred_check_branch
          %127 = sbr.rel (%p125) target = $region20
        $region19: #{tpu_custom_call.1} parent=11 // pred_region
          %s129 = ssub.s32 16, 16
          %130 = vsyncadd [#allocation4], %s129
          %s132 = sshll.u32 %s2, 4
          %s133 = int_to_ptr.vmem [resolvable:$true] %s132
          %135 = dma.vmem_to_smem %s133, 16, [#allocation2], [#allocation4]
        $region20: #{tpu_custom_call.1} parent=11 // pred_fallthru
          _
      $region12: #{tpu_custom_call.1} parent=5 // pred_fallthru
        _
      %p136 = scmp.lt.s32.totalorder %s13, 2
      // Predicated region
      $region21: #{tpu_custom_call.1} parent=5 // pred_check
        %p137 = pneg %p136
      $region22: #{tpu_custom_call.1} parent=5 // pred_check_branch
        %139 = sbr.rel (%p137) target = $region24
      $region23: #{tpu_custom_call.1} parent=5 // pred_region
        // Predicated region
        $region25: #{tpu_custom_call.1} parent=23 // pred_check
          %p140 = pneg %p33
        $region26: #{tpu_custom_call.1} parent=23 // pred_check_branch
          %142 = sbr.rel (%p140) target = $region28
        $region27: #{tpu_custom_call.1} parent=23 // pred_region
          %p143 = scmp.lt.s32.totalorder %s13, 1
          %s144 = scalar_select %p143, %s13, 1
          %s145 = smul.addr %s144, 2
          %s146 = smul.addr %s145, 4
          %s147 = scalar_lea.vmem %s0, %s146
        $region28: #{tpu_custom_call.1} parent=23 // pred_fallthru
          _
      $region24: #{tpu_custom_call.1} parent=5 // pred_fallthru
        _
      %p148 = scmp.le.s32.totalorder 1, %s13
      %p149 = scmp.lt.s32.totalorder %s13, 3
      %p150 = pnand %p148, %p149
      %p151 = pneg %p150
      // Predicated region
      $region29: #{tpu_custom_call.1} parent=5 // pred_check
        _
      $region30: #{tpu_custom_call.1} parent=5 // pred_check_branch
        %153 = sbr.rel (%p150) target = $region32
      $region31: #{tpu_custom_call.1} parent=5 // pred_region
        %s154 = ssub.s32 %s13, 1
        // Predicated region
        $region33: #{tpu_custom_call.1} parent=31 // pred_check
          %p155 = pneg %p81
        $region34: #{tpu_custom_call.1} parent=31 // pred_check_branch
          %157 = sbr.rel (%p155) target = $region36
        $region35: #{tpu_custom_call.1} parent=31 // pred_region
          %158 = dma.done [#allocation4], 16
        $region36: #{tpu_custom_call.1} parent=31 // pred_fallthru
          _
        %159 = sfence
        %p160 = scmp.lt.s32.totalorder %s18, 1
        %s161 = scalar_select %p160, %s18, 1
        %s162 = smul.addr %s161, 2
        %s163 = smul.addr %s162, 4
        %s164 = scalar_lea.vmem %s0, %s163
        %p165 = pneg %p39
        %p166 = pneg %p36
        %p167 = pneg %p60
        %p168 = pneg %p57
        %p169 = pneg %p81
        %p170 = pneg %p78
        %p171 = pneg %p107
        %p172 = pneg %p104
        %s173 = sand.u32 %s94, 1
        %s174 = scalar_lea.sflag [#allocation3], %s173
        %s175 = sand.u32 %s94, 1
        %s176 = smul.addr %s175, 8
        %s177 = scalar_lea.vmem [#allocation5], %s176
        %p178 = scmp.lt.s32.totalorder %s18, 1
        %s179 = scalar_select %p178, %s18, 1
        %s180 = smul.addr %s179, 2
        %s181 = smul.addr %s180, 4
        %s182 = scalar_lea.vmem %s0, %s181
        %v183 = vld [vmem:[%s182] sm:$0xff]
        %v184 = vld [vmem:[%s1] sm:$0xf]
        %v185 = vld [vmem:[%s1 + $0x4] sm:$0xf]
        %v186 = vld [vmem:[%s1 + $0x8] sm:$0xf]
        %v187 = vld [vmem:[%s1 + $0xc] sm:$0xf]
        %v188 = vld [vmem:[%s1 + $0x10] sm:$0xf]
        %s189 = sld [smem:[#allocation2]]
        %s190 = sld [smem:[#allocation2 + $0x1]]
        %s191 = sld [smem:[#allocation2 + $0x2]]
        %193 = vset.pattern.permute.xlu0 0
        %194 = vperm.xlu0 %193, %v184
        %v195 = vpop.permute.xlu0 %194
        %v197 = vunpack.c.l.s4 839922192
        %v198 = vunpack.c.0.s8 %v197
        %v199 = vlaneseq
        %v200 = vshrl.u32 %v199, 7
        %v201 = vsub.s32 %v198, %v200
        %v202 = vrot.slane %v195, %v201
        %v204 = vmul.f32 %v183, %v202
        %v206 = vcombine.high %v204, %v204
        %vm208 = vcmask 1043456
        %v209 = vsel %vm208, %v204, 0.0
        %v210 = vrot.slane %v209, 4
        %v211 = vadd.f32 %v209, %v210
        %v212 = vrot.slane %v211, 2
        %v213 = vadd.f32 %v211, %v212
        %v214 = vrot.slane %v213, 1
        %v215 = vadd.f32 %v213, %v214
        %v216 = vsel %vm208, %v206, 0.0
        %v217 = vrot.slane %v216, 4
        %v218 = vadd.f32 %v216, %v217
        %v219 = vrot.slane %v218, 2
        %v220 = vadd.f32 %v218, %v219
        %v221 = vrot.slane %v220, 1
        %v222 = vadd.f32 %v220, %v221
        %v223 = vstv %s189
        %v224 = vadd.f32 %v215, %v223
        %v225 = vadd.f32 %v222, %v223
        %227 = vset.pattern.permute.xlu0 0
        %228 = vperm.xlu0 %227, %v185
        %v229 = vpop.permute.xlu0 %228
        %v231 = vunpack.c.l.s4 839922192
        %v232 = vunpack.c.0.s8 %v231
        %v233 = vlaneseq
        %v234 = vshrl.u32 %v233, 7
        %v235 = vsub.s32 %v232, %v234
        %v236 = vrot.slane %v229, %v235
        %v238 = vmul.f32 %v183, %v236
        %v240 = vcombine.high %v238, %v238
        %v242 = vsel %vm208, %v238, 0.0
        %v243 = vrot.slane %v242, 4
        %v244 = vadd.f32 %v242, %v243
        %v245 = vrot.slane %v244, 2
        %v246 = vadd.f32 %v244, %v245
        %v247 = vrot.slane %v246, 1
        %v248 = vadd.f32 %v246, %v247
        %v249 = vsel %vm208, %v240, 0.0
        %v250 = vrot.slane %v249, 4
        %v251 = vadd.f32 %v249, %v250
        %v252 = vrot.slane %v251, 2
        %v253 = vadd.f32 %v251, %v252
        %v254 = vrot.slane %v253, 1
        %v255 = vadd.f32 %v253, %v254
        %v256 = vstv %s190
        %v257 = vadd.f32 %v248, %v256
        %v258 = vadd.f32 %v255, %v256
        %260 = vset.pattern.permute.xlu0 0
        %261 = vperm.xlu0 %260, %v186
        %v262 = vpop.permute.xlu0 %261
        %v264 = vunpack.c.l.s4 839922192
        %v265 = vunpack.c.0.s8 %v264
        %v266 = vlaneseq
        %v267 = vshrl.u32 %v266, 7
        %v268 = vsub.s32 %v265, %v267
        %v269 = vrot.slane %v262, %v268
        %v271 = vmul.f32 %v183, %v269
        %v273 = vcombine.high %v271, %v271
        %v275 = vsel %vm208, %v271, 0.0
        %v276 = vrot.slane %v275, 4
        %v277 = vadd.f32 %v275, %v276
        %v278 = vrot.slane %v277, 2
        %v279 = vadd.f32 %v277, %v278
        %v280 = vrot.slane %v279, 1
        %v281 = vadd.f32 %v279, %v280
        %v282 = vsel %vm208, %v273, 0.0
        %v283 = vrot.slane %v282, 4
        %v284 = vadd.f32 %v282, %v283
        %v285 = vrot.slane %v284, 2
        %v286 = vadd.f32 %v284, %v285
        %v287 = vrot.slane %v286, 1
        %v288 = vadd.f32 %v286, %v287
        %v289 = vstv %s191
        %v290 = vadd.f32 %v281, %v289
        %v291 = vadd.f32 %v288, %v289
        %v292 = vmul.f32 %v257, %v290
        %v293 = vmul.f32 %v258, %v291
        %v294 = vadd.f32 %v292, %v293
        %295 = vadd.xlane.f32.xlu0 %v294
        %v296 = vpop.xlane.xlu0 %295
        %v297 = vmul.f32 %v296, 0.00390625
        %v298 = vmul.f32 %v224, %v297
        %v299 = vmul.f32 %v225, %v297
        %301 = vset.pattern.permute.xlu0 0
        %302 = vperm.xlu0 %301, %v187
        %v303 = vpop.permute.xlu0 %302
        %v305 = vmul.f32 %v303, %v298
        %v306 = vmul.f32 %v303, %v299
        %v309 = vcombine.low %v305, %v306
        %v311 = vadd.f32 %v183, %v309
        %313 = vset.pattern.permute.xlu0 0
        %314 = vperm.xlu0 %313, %v188
        %v315 = vpop.permute.xlu0 %314
        %v317 = vunpack.c.l.s4 839922192
        %v318 = vunpack.c.0.s8 %v317
        %v319 = vlaneseq
        %v320 = vshrl.u32 %v319, 7
        %v321 = vsub.s32 %v318, %v320
        %v322 = vrot.slane %v315, %v321
        %v324 = vadd.f32 %v311, %v322
        %325 = vst [vmem:[%s177] sm:$0xff] %v324
        %s326 = sand.u32 %s94, 1
        %s327 = scalar_lea.sflag [#allocation3], %s326
        %s328 = sand.u32 %s94, 1
        %s329 = smul.addr %s328, 8
        %s330 = scalar_lea.vmem [#allocation5], %s329
        // Predicated region
        $region37: #{tpu_custom_call.1} parent=31 // pred_check
          %p331 = pneg %p104
        $region38: #{tpu_custom_call.1} parent=31 // pred_check_branch
          %333 = sbr.rel (%p331) target = $region40
        $region39: #{tpu_custom_call.1} parent=31 // pred_region
          %s335 = ssub.s32 128, 128
          %336 = vsyncadd %s327, %s335
          %s337 = smul.addr %s18, 2
          %s338 = smul.addr %s337, 64
          %s339 = scalar_lea.hbm %s3, %s338
          %s341 = sshll.u32 %s330, 4
          %s342 = int_to_ptr.vmem [resolvable:$true] %s341
          %344 = dma.vmem_to_hbm [thread:$0]  %s342, 128, %s339, %s327
        $region40: #{tpu_custom_call.1} parent=31 // pred_fallthru
          _
      $region32: #{tpu_custom_call.1} parent=5 // pred_fallthru
        _
      %p345 = scmp.le.s32.totalorder 2, %s13
      // Predicated region
      $region41: #{tpu_custom_call.1} parent=5 // pred_check
        %p346 = pneg %p345
      $region42: #{tpu_custom_call.1} parent=5 // pred_check_branch
        %348 = sbr.rel (%p346) target = $region44
      $region43: #{tpu_custom_call.1} parent=5 // pred_region
        %s349 = ssub.s32 %s13, 2
        // Predicated region
        $region45: #{tpu_custom_call.1} parent=43 // pred_check
          %p350 = pneg %p110
        $region46: #{tpu_custom_call.1} parent=43 // pred_check_branch
          %352 = sbr.rel (%p350) target = $region48
        $region47: #{tpu_custom_call.1} parent=43 // pred_region
          %s353 = sand.u32 %s95, 1
          %s354 = scalar_lea.sflag [#allocation3], %s353
          %s355 = sand.u32 %s95, 1
          %s356 = smul.addr %s355, 8
          %s357 = scalar_lea.vmem [#allocation5], %s356
          %358 = dma.done %s354, 128
        $region48: #{tpu_custom_call.1} parent=43 // pred_fallthru
          _
      $region44: #{tpu_custom_call.1} parent=5 // pred_fallthru
        _
    $region6: #{tpu_custom_call.1} parent=1 // loop_footer
      %s17 = sadd.s32 1, %s13
    $region7: #{tpu_custom_call.1} parent=1 // loop_footer_branch
      %12 = sbr.rel target = $region3
    $region8: #{tpu_custom_call.1} parent=1 // loop_exit
      _
    %359 = vsyncpa [#allocation3], 1
    %s360 = scalar_lea.sflag [#allocation3], 1
    %361 = vsyncpa %s360, 1
    %362 = vsyncpa [#allocation4], 1
    %s363 = scalar_lea.sflag [#allocation4], 1
    %364 = vsyncpa %s363, 1

</llo_original>
